<compile_context>
chip_gen: v6e
topology: v6e:2x2x1
jax: 0.10.0
libtpu: 0.0.40
codegen_flags: <defaults>
</compile_context>

<pallas_src>
from types import SimpleNamespace

import jax
import jax.numpy as jnp
from jax.experimental import pallas as pl
from jax.experimental.pallas import tpu as pltpu


# ----------------------------- Pallas kernels -------------------------------

def fused_affine_matmul_kernel(x_ref, kt_ref, bias_ref, o_ref):
    # o = x @ kt + bias   (0.5*x+0.5 affine and normalizer pre-folded into kt / bias)
    # x:(tm,K) f32, kt:(K,tn) f32, bias:(1,tn) f32, o:(tm,tn) f32
    o_ref[...] = (
        jnp.dot(x_ref[...], kt_ref[...], preferred_element_type=jnp.float32)
        + bias_ref[...]
    )


def circ_conv_pallas(x, kt, bias, *, vmem_budget_bytes=12 << 20):
    """out = x @ kt + bias (f32).  x:(M,K), kt:(K,N), bias:(1,N)."""
    M, K = x.shape
    K2, N = kt.shape
    assert K == K2 and bias.shape == (1, N)

    total_bytes = 4 * (M * K + K * N + N + 2 * M * N)
    if total_bytes <= (4 << 20):
        # Small path (this model): single un-gridded call, everything resident in VMEM,
        # one MXU matmul, no per-step pipeline overhead.
        # NOTE: at M=8 the op is pure fixed overhead; batch more (b,c)/frames per call
        # to fill MXU rows — throughput scales ~linearly with M.
        return pl.pallas_call(
            fused_affine_matmul_kernel,
            out_shape=jax.ShapeDtypeStruct((M, N), jnp.float32),
            in_specs=[
                pl.BlockSpec(memory_space=pltpu.MemorySpace.VMEM),
                pl.BlockSpec(memory_space=pltpu.MemorySpace.VMEM),
                pl.BlockSpec(memory_space=pltpu.MemorySpace.VMEM),
            ],
            out_specs=pl.BlockSpec(memory_space=pltpu.MemorySpace.VMEM),
        )(x, kt, bias)

    # ----- tiled fallback for larger batch / FFT sizes -----
    # Parallel M axis so v7x's two TensorCores split rows; N axis streams lane-dense
    # KT column blocks sized from a conservative VMEM budget (<< 64 MiB v7x per-TC).
    if M >= 512 and M % 256 == 0:
        tm = 256
    else:
        tm = M

    def fits(tn_):
        # x block (single or double buffered) + 2x kt block + 2x out block + 2x bias
        return (2 * tm * K * 4 + 2 * K * tn_ * 4 + 2 * tm * tn_ * 4 + 2 * tn_ * 4
                ) <= vmem_budget_bytes

    tn, cand = 0, 256
    while cand <= N:
        if N % cand == 0 and fits(cand):
            tn = cand
        cand *= 2
    assert tn >= 256 and N % tn == 0, "fallback requires N to be a multiple of 256"

    if M == tm:
        # x is constant-indexed across the grid: no need for a double buffer.
        x_spec = pl.BlockSpec((tm, K), lambda i, j: (0, 0),
                              pipeline_mode=pl.Buffered(1))
    else:
        x_spec = pl.BlockSpec((tm, K), lambda i, j: (i, 0))

    return pl.pallas_call(
        fused_affine_matmul_kernel,
        out_shape=jax.ShapeDtypeStruct((M, N), jnp.float32),
        grid_spec=pltpu.PrefetchScalarGridSpec(
            num_scalar_prefetch=0,
            grid=(M // tm, N // tn),
            in_specs=[
                x_spec,
                pl.BlockSpec((K, tn), lambda i, j: (0, j)),
                pl.BlockSpec((1, tn), lambda i, j: (0, j)),
            ],
            out_specs=pl.BlockSpec((tm, tn), lambda i, j: (i, j)),
        ),
        # No vmem_limit_bytes override: the working set is sized to fit the default
        # scoped limit on all of v5e / v6e / v7x.
        compiler_params=pltpu.CompilerParams(
            dimension_semantics=("parallel", "parallel"),
        ),
    )(x, kt, bias)


# ------------------------------- glue / init --------------------------------

def roll_n(x, axis, n):
    # torch roll_n: cat([x[n:], x[:n]], axis)  ==  jnp.roll(x, -n, axis)
    return jnp.roll(x, -n, axis=axis)


def get_wiener_matrix(psf, gamma=20000.0, centre_roll=True):
    if centre_roll:
        for dim in range(2):
            psf = roll_n(psf, axis=dim, n=psf.shape[dim] // 2)
    psf = psf[None]
    H = jnp.fft.fft2(psf)
    Habsq = H * jnp.conj(H)
    W = jnp.conj(H) / (jnp.real(Habsq) + gamma)
    return jnp.real(jnp.fft.ifft2(W))[0]


class FFTLayerPallas:
    def __init__(self, args, key):
        self.args = args
        # Synthetic PSF crop stands in for np.load(args.psf_mat)[crop window].
        psf_crop = jax.random.uniform(
            key, (args.psf_crop_size_x, args.psf_crop_size_y), dtype=jnp.float32)
        self.psf_height, self.psf_width = psf_crop.shape
        self.wiener_crop = get_wiener_matrix(
            psf_crop, gamma=float(args.fft_gamma), centre_roll=False
        ).astype(jnp.float32)
        self.normalizer = jnp.array([1.0 / 0.0008], jnp.float32).reshape(1, 1, 1, 1)
        # TODO(synk): args.use_mask path (mask loaded from .npy) not modeled; use_mask=False.

        # ---- cached, crop-aware fused operator (hoisted out of __call__) ----
        # NOTE: wiener_crop / normalizer are trainable nn.Parameters in PyTorch; these
        # caches must be rebuilt whenever they change (inference-style caching here).
        fl = self._build_fft_layer()
        self.fft_h, self.fft_w = fl.shape
        kt_full = self._build_cropped_circulant(fl) * self.normalizer.reshape(())
        # forward:  out = (0.5*img_crop + 0.5) @ kt_full
        #               = img_crop @ (0.5*kt_full) + 0.5*sum_k kt_full[k, :]
        self.kt = (0.5 * kt_full).astype(jnp.float32)                                  # (K, N)
        self.bias = (0.5 * jnp.sum(kt_full, axis=0, keepdims=True)).astype(jnp.float32)  # (1, N)

    # fft_layer = roll(pad(wiener_crop))  -- identical to the PyTorch forward
    def _build_fft_layer(self):
        pad_x = self.args.psf_height - self.args.psf_crop_size_x
        pad_y = self.args.psf_width - self.args.psf_crop_size_y
        fl = 1.0 * self.wiener_crop
        fl = jnp.pad(fl, ((pad_x // 2, pad_x // 2), (pad_y // 2, pad_y // 2)))
        for dim in range(2):
            fl = roll_n(fl, axis=dim, n=fl.shape[dim] // 2)
        return fl  # (fft_h, fft_w)

    # Circular conv: out[i,j] = sum_{p,q} x_pad[p,q] * fl[(i-p)%H, (j-q)%W].
    # x_pad is zero outside the crop window and the output is cropped afterwards, so
    # only the (crop rows) x (output-crop cols) block of the circulant is needed:
    #   KT[(p-p0)*pw + (q-q0), (i-i0)*iw + (j-j0)] = fl[(i-p)%H, (j-q)%W]
    def _build_cropped_circulant(self, fl):
        H, W = fl.shape
        args = self.args
        pad_x = args.psf_height - args.psf_crop_size_x
        pad_y = args.psf_width - args.psf_crop_size_y
        p = pad_x // 2 + jnp.arange(self.psf_height)                          # nonzero input rows
        q = pad_y // 2 + jnp.arange(self.psf_width)                           # nonzero input cols
        i = H // 2 - args.image_height // 2 + jnp.arange(args.image_height)   # kept output rows
        j = W // 2 - args.image_width // 2 + jnp.arange(args.image_width)     # kept output cols
        di = (i[None, :] - p[:, None]) % H                                    # (ph, ih)
        dj = (j[None, :] - q[:, None]) % W                                    # (pw, iw)
        kt = fl[di[:, None, :, None], dj[None, :, None, :]]                   # (ph, pw, ih, iw)
        return kt.reshape(self.psf_height * self.psf_width,
                          args.image_height * args.image_width)

    def __call__(self, img):
        args = self.args
        B, C, h, w = img.shape
        r0 = (h - self.psf_height) // 2
        c0 = (w - self.psf_width) // 2
        # Only a static crop + leading-dim reshape remain here; the 0.5*x+0.5 affine,
        # normalizer, and output crop are folded into self.kt / self.bias in-kernel.
        # TODO(synk): the crop itself could also move in-kernel via pl.Element offsets,
        # but the in-kernel (M,16,16)->(M,256) relayout is not worth the lowering risk.
        x = img[:, :, r0:r0 + self.psf_height, c0:c0 + self.psf_width]
        x = x.reshape(B * C, self.psf_height * self.psf_width)   # (M, K) f32
        out = circ_conv_pallas(x, self.kt, self.bias)            # (M, N) f32
        return out.reshape(B, C, args.image_height, args.image_width)

    # ---------------- pure-JAX FFT reference (mirrors the PyTorch forward) ----------
    def _preprocess_pad(self, img):
        args = self.args
        pad_x = args.psf_height - args.psf_crop_size_x
        pad_y = args.psf_width - args.psf_crop_size_y
        img = 0.5 * img + 0.5
        h, w = img.shape[2], img.shape[3]
        img = img[:, :,
                  (h - self.psf_height) // 2:(h + self.psf_height) // 2,
                  (w - self.psf_width) // 2:(w + self.psf_width) // 2]
        img = jnp.pad(img, ((0, 0), (0, 0),
                            (pad_x // 2, pad_x // 2), (pad_y // 2, pad_y // 2)))
        return img

    def reference(self, img):
        args = self.args
        fl = self._build_fft_layer()[None, None]
        fft_h, fft_w = fl.shape[2], fl.shape[3]
        img_h, img_w = args.image_height, args.image_width
        img = self._preprocess_pad(img)
        out = jnp.real(jnp.fft.ifft2(jnp.fft.fft2(img) * jnp.fft.fft2(fl)))
        out = out * self.normalizer
        out = out[:, :,
                  fft_h // 2 - img_h // 2: fft_h // 2 + img_h // 2,
                  fft_w // 2 - img_w // 2: fft_w // 2 + img_w // 2]
        return out


# ---------------------------------- main -------------------------------------

if __name__ == "__main__":
    args = SimpleNamespace(
        psf_height=32, psf_width=32,             # padded / FFT size
        psf_crop_size_x=16, psf_crop_size_y=16,  # PSF crop (wiener param shape)
        image_height=16, image_width=16,         # final output crop
        fft_gamma=20000,
        use_mask=False,
    )

    key = jax.random.PRNGKey(0)
    k_psf, k_img = jax.random.split(key)

    layer = FFTLayerPallas(args, k_psf)
    img = jax.random.normal(k_img, (2, 4, 32, 32), dtype=jnp.float32)  # NCHW

    fwd = jax.jit(layer.__call__)
    out = jax.block_until_ready(fwd(img))
    ref = jax.block_until_ready(layer.reference(img))

    assert out.shape == (2, 4, args.image_height, args.image_width), out.shape
    rel = float(jnp.linalg.norm(out - ref) / (jnp.linalg.norm(ref) + 1e-12))
    assert rel < 1e-2, f"relative error too high: {rel}"

    print("KERNEL_OK")
</pallas_src>

<mosaic_0001>
module attributes {stable_mosaic.version = 11 : i64} {
  func.func @fused_affine_matmul_kernel(%arg0: memref<8x256xf32, #tpu.memory_space<vmem>>, %arg1: memref<256x256xf32, #tpu.memory_space<vmem>>, %arg2: memref<1x256xf32, #tpu.memory_space<vmem>>, %arg3: memref<8x256xf32, #tpu.memory_space<vmem>>) attributes {dimension_semantics = [], scalar_prefetch = 0 : i64, scratch_operands = 0 : i64, tpu.core_type = #tpu.core_type<tc>} {
    %c0 = arith.constant 0 : index
    %c0_0 = arith.constant 0 : index
    %0 = vector.load %arg0[%c0, %c0_0] : memref<8x256xf32, #tpu.memory_space<vmem>>, vector<8x256xf32>
    %c0_1 = arith.constant 0 : index
    %c0_2 = arith.constant 0 : index
    %1 = vector.load %arg1[%c0_1, %c0_2] : memref<256x256xf32, #tpu.memory_space<vmem>>, vector<256x256xf32>
    %cst = arith.constant dense<0.000000e+00> : vector<8x256xf32>
    %2 = tpu.matmul %0, %1, %cst {dimension_numbers = #tpu.dot_dimension_numbers<[1], [0], [0], [1], [0, 0, 1, 1], [], []>} : vector<8x256xf32>, vector<256x256xf32>, vector<8x256xf32> -> vector<8x256xf32>
    %c0_3 = arith.constant 0 : index
    %c0_4 = arith.constant 0 : index
    %3 = vector.load %arg2[%c0_3, %c0_4] : memref<1x256xf32, #tpu.memory_space<vmem>>, vector<1x256xf32>
    %4 = vector.broadcast %3 : vector<1x256xf32> to vector<8x256xf32>
    %5 = arith.addf %2, %4 : vector<8x256xf32>
    %c0_5 = arith.constant 0 : index
    %c0_6 = arith.constant 0 : index
    %6 = vector.load %arg3[%c0_5, %c0_6] : memref<8x256xf32, #tpu.memory_space<vmem>>, vector<8x256xf32>
    tpu.vector_store %arg3[%c0_5, %c0_6], %5 {strides = array<i32>} : memref<8x256xf32, #tpu.memory_space<vmem>>, vector<8x256xf32>,
    return
  }
}

</mosaic_0001>

<llo_original>
// kernel: a_call__.1
$region0: #{a_call__.1}
  #allocation0 [shape = 'u32[]', space=smem, size = 0x4, offset = 0x4, fixed_abs, tag = 'smem constant byte address 0x4 - core index']
  #allocation1 [shape = 'u32[144,128]{1,0:T(1,128)}', space=vmem, size = 0x12000, scoped, tag = 'internal scratch']
  %s0 = inlined_call_operand.vmem [shape: f32[8,256], index: 0, kind: input, shape index: {}]
  %s1 = inlined_call_operand.hbm [shape: f32[256,256], index: 1, kind: input, shape index: {}]
  %s2 = inlined_call_operand.vmem [shape: f32[1,256], index: 2, kind: input, shape index: {}]
  %s3 = inlined_call_operand.vmem [shape: f32[8,256], index: 3, kind: output, shape index: {}]
  %s4 = sld [smem:[#allocation0]]
  $region26: #{a_call__.1} parent=0
    _
  %s6 = ssub.s32 1, %s4
  %s7 = scalar_select 0, %s6, %s4
  $region1: #{a_call__.1} parent=0
    #allocation2 [shape = 'u8[262144]{0}', space=vmem, size = 0x40000, scoped, tag = 'input window, operand 1, single buffered']
    #allocation3 [shape = 's32[1]{0}', space=sflag, size = 0x4, scoped, tag = 'scoped memory for a_call__.1']
    %8 = vsyncpa [#allocation3], 0
    // Predicated region
    $region2: #{a_call__.1} parent=1 // pred_check
      _
    $region3: #{a_call__.1} parent=1 // pred_check_branch
      %10 = sbr.rel (0) target = $region5
    $region4: #{a_call__.1} parent=1 // pred_region
      _
    $region5: #{a_call__.1} parent=1 // pred_fallthru
      _
    // Predicated region
    $region6: #{a_call__.1} parent=1 // pred_check
      _
    $region7: #{a_call__.1} parent=1 // pred_check_branch
      %12 = sbr.rel (0) target = $region9
    $region8: #{a_call__.1} parent=1 // pred_region
      %s14 = ssub.s32 8192, 8192
      %15 = vsyncadd [#allocation3], %s14
      %s16 = sshll.u32 [#allocation2], 4
      %s17 = int_to_ptr.vmem [resolvable:$true] %s16
      %22 = dma.hbm_to_vmem [thread:$0]  %s1, 8192, %s17, [#allocation3], 256, 256, 16
    $region9: #{a_call__.1} parent=1 // pred_fallthru
      _
    // Predicated region
    $region10: #{a_call__.1} parent=1 // pred_check
      _
    $region11: #{a_call__.1} parent=1 // pred_check_branch
      %24 = sbr.rel (0) target = $region13
    $region12: #{a_call__.1} parent=1 // pred_region
      _
    $region13: #{a_call__.1} parent=1 // pred_fallthru
      _
    // Predicated region
    $region14: #{a_call__.1} parent=1 // pred_check
      _
    $region15: #{a_call__.1} parent=1 // pred_check_branch
      %26 = sbr.rel (0) target = $region17
    $region16: #{a_call__.1} parent=1 // pred_region
      %27 = dma.done [#allocation3], 8192
    $region17: #{a_call__.1} parent=1 // pred_fallthru
      _
    %v28 = vld [vmem:[%s0] sm:$0xff]
    %v29 = vld [vmem:[%s0 + $0x8] sm:$0xff]
    %v30 = vld [vmem:[#allocation2] sm:$0xff]
    %v31 = vld [vmem:[#allocation2 + $0x8] sm:$0xff]
    %v32 = vld [vmem:[#allocation2 + $0x10] sm:$0xff]
    %v33 = vld [vmem:[#allocation2 + $0x18] sm:$0xff]
    %v34 = vld [vmem:[#allocation2 + $0x20] sm:$0xff]
    %v35 = vld [vmem:[#allocation2 + $0x28] sm:$0xff]
    %v36 = vld [vmem:[#allocation2 + $0x30] sm:$0xff]
    %v37 = vld [vmem:[#allocation2 + $0x38] sm:$0xff]
    %v38 = vld [vmem:[#allocation2 + $0x40] sm:$0xff]
    %v39 = vld [vmem:[#allocation2 + $0x48] sm:$0xff]
    %v40 = vld [vmem:[#allocation2 + $0x50] sm:$0xff]
    %v41 = vld [vmem:[#allocation2 + $0x58] sm:$0xff]
    %v42 = vld [vmem:[#allocation2 + $0x60] sm:$0xff]
    %v43 = vld [vmem:[#allocation2 + $0x68] sm:$0xff]
    %v44 = vld [vmem:[#allocation2 + $0x70] sm:$0xff]
    %v45 = vld [vmem:[#allocation2 + $0x78] sm:$0xff]
    %v46 = vld [vmem:[#allocation2 + $0x80] sm:$0xff]
    %v47 = vld [vmem:[#allocation2 + $0x88] sm:$0xff]
    %v48 = vld [vmem:[#allocation2 + $0x90] sm:$0xff]
    %v49 = vld [vmem:[#allocation2 + $0x98] sm:$0xff]
    %v50 = vld [vmem:[#allocation2 + $0xa0] sm:$0xff]
    %v51 = vld [vmem:[#allocation2 + $0xa8] sm:$0xff]
    %v52 = vld [vmem:[#allocation2 + $0xb0] sm:$0xff]
    %v53 = vld [vmem:[#allocation2 + $0xb8] sm:$0xff]
    %v54 = vld [vmem:[#allocation2 + $0xc0] sm:$0xff]
    %v55 = vld [vmem:[#allocation2 + $0xc8] sm:$0xff]
    %v56 = vld [vmem:[#allocation2 + $0xd0] sm:$0xff]
    %v57 = vld [vmem:[#allocation2 + $0xd8] sm:$0xff]
    %v58 = vld [vmem:[#allocation2 + $0xe0] sm:$0xff]
    %v59 = vld [vmem:[#allocation2 + $0xe8] sm:$0xff]
    %v60 = vld [vmem:[#allocation2 + $0xf0] sm:$0xff]
    %v61 = vld [vmem:[#allocation2 + $0xf8] sm:$0xff]
    %v62 = vld [vmem:[#allocation2 + $0x100] sm:$0xff]
    %v63 = vld [vmem:[#allocation2 + $0x108] sm:$0xff]
    %v64 = vld [vmem:[#allocation2 + $0x110] sm:$0xff]
    %v65 = vld [vmem:[#allocation2 + $0x118] sm:$0xff]
    %v66 = vld [vmem:[#allocation2 + $0x120] sm:$0xff]
    %v67 = vld [vmem:[#allocation2 + $0x128] sm:$0xff]
    %v68 = vld [vmem:[#allocation2 + $0x130] sm:$0xff]
    %v69 = vld [vmem:[#allocation2 + $0x138] sm:$0xff]
    %v70 = vld [vmem:[#allocation2 + $0x140] sm:$0xff]
    %v71 = vld [vmem:[#allocation2 + $0x148] sm:$0xff]
    %v72 = vld [vmem:[#allocation2 + $0x150] sm:$0xff]
    %v73 = vld [vmem:[#allocation2 + $0x158] sm:$0xff]
    %v74 = vld [vmem:[#allocation2 + $0x160] sm:$0xff]
    %v75 = vld [vmem:[#allocation2 + $0x168] sm:$0xff]
    %v76 = vld [vmem:[#allocation2 + $0x170] sm:$0xff]
    %v77 = vld [vmem:[#allocation2 + $0x178] sm:$0xff]
    %v78 = vld [vmem:[#allocation2 + $0x180] sm:$0xff]
    %v79 = vld [vmem:[#allocation2 + $0x188] sm:$0xff]
    %v80 = vld [vmem:[#allocation2 + $0x190] sm:$0xff]
    %v81 = vld [vmem:[#allocation2 + $0x198] sm:$0xff]
    %v82 = vld [vmem:[#allocation2 + $0x1a0] sm:$0xff]
    %v83 = vld [vmem:[#allocation2 + $0x1a8] sm:$0xff]
    %v84 = vld [vmem:[#allocation2 + $0x1b0] sm:$0xff]
    %v85 = vld [vmem:[#allocation2 + $0x1b8] sm:$0xff]
    %v86 = vld [vmem:[#allocation2 + $0x1c0] sm:$0xff]
    %v87 = vld [vmem:[#allocation2 + $0x1c8] sm:$0xff]
    %v88 = vld [vmem:[#allocation2 + $0x1d0] sm:$0xff]
    %v89 = vld [vmem:[#allocation2 + $0x1d8] sm:$0xff]
    %v90 = vld [vmem:[#allocation2 + $0x1e0] sm:$0xff]
    %v91 = vld [vmem:[#allocation2 + $0x1e8] sm:$0xff]
    %v92 = vld [vmem:[#allocation2 + $0x1f0] sm:$0xff]
    %v93 = vld [vmem:[#allocation2 + $0x1f8] sm:$0xff]
    %v94 = vld [vmem:[%s2] sm:$0x3]
    %v96 = vlaneseq
    %v97 = vshrl.u32 %v96, 7
    %v98 = vsub.s32 0, %v97
    %v99 = vrot.slane %v94, %v98
    %v100 = vlaneseq
    %v101 = vshrl.u32 %v100, 7
    %v102 = vsub.s32 1, %v101
    %v103 = vrot.slane %v94, %v102
    %106 = vmatprep.subr.mxu0 %v61
    %107 = vmatpush1.msra.mxu0 %v60
    %108 = vmatprep.subr.mxu0 %v59
    %109 = vmatpush1.msra.mxu0 %v58
    %110 = vmatprep.subr.mxu0 %v57
    %111 = vmatpush1.msra.mxu0 %v56
    %112 = vmatprep.subr.mxu0 %v55
    %113 = vmatpush1.msra.mxu0 %v54
    %114 = vmatprep.subr.mxu0 %v53
    %115 = vmatpush1.msra.mxu0 %v52
    %116 = vmatprep.subr.mxu0 %v51
    %117 = vmatpush1.msra.mxu0 %v50
    %118 = vmatprep.subr.mxu0 %v49
    %119 = vmatpush1.msra.mxu0 %v48
    %120 = vmatprep.subr.mxu0 %v47
    %121 = vmatpush1.msra.mxu0 %v46
    %122 = vmatprep.subr.mxu0 %v45
    %123 = vmatpush1.msra.mxu0 %v44
    %124 = vmatprep.subr.mxu0 %v43
    %125 = vmatpush1.msra.mxu0 %v42
    %126 = vmatprep.subr.mxu0 %v41
    %127 = vmatpush1.msra.mxu0 %v40
    %128 = vmatprep.subr.mxu0 %v39
    %129 = vmatpush1.msra.mxu0 %v38
    %130 = vmatprep.subr.mxu0 %v37
    %131 = vmatpush1.msra.mxu0 %v36
    %132 = vmatprep.subr.mxu0 %v35
    %133 = vmatpush1.msra.mxu0 %v34
    %134 = vmatprep.subr.mxu0 %v33
    %135 = vmatpush1.msra.mxu0 %v32
    %136 = vmatprep.subr.mxu0 %v31
    %137 = vmatpush1.msra.mxu0 %v30
    %138 = vmatprep.subr.mxu0 %v93
    %139 = vmatpush2.msra.mxu0 %v92
    %140 = vmatprep.subr.mxu0 %v91
    %141 = vmatpush2.msra.mxu0 %v90
    %142 = vmatprep.subr.mxu0 %v89
    %143 = vmatpush2.msra.mxu0 %v88
    %144 = vmatprep.subr.mxu0 %v87
    %145 = vmatpush2.msra.mxu0 %v86
    %146 = vmatprep.subr.mxu0 %v85
    %147 = vmatpush2.msra.mxu0 %v84
    %148 = vmatprep.subr.mxu0 %v83
    %149 = vmatpush2.msra.mxu0 %v82
    %150 = vmatprep.subr.mxu0 %v81
    %151 = vmatpush2.msra.mxu0 %v80
    %152 = vmatprep.subr.mxu0 %v79
    %153 = vmatpush2.msra.mxu0 %v78
    %154 = vmatprep.subr.mxu0 %v77
    %155 = vmatpush2.msra.mxu0 %v76
    %156 = vmatprep.subr.mxu0 %v75
    %157 = vmatpush2.msra.mxu0 %v74
    %158 = vmatprep.subr.mxu0 %v73
    %159 = vmatpush2.msra.mxu0 %v72
    %160 = vmatprep.subr.mxu0 %v71
    %161 = vmatpush2.msra.mxu0 %v70
    %162 = vmatprep.subr.mxu0 %v69
    %163 = vmatpush2.msra.mxu0 %v68
    %164 = vmatprep.subr.mxu0 %v67
    %165 = vmatpush2.msra.mxu0 %v66
    %166 = vmatprep.subr.mxu0 %v65
    %167 = vmatpush2.msra.mxu0 %v64
    %168 = vmatprep.subr.mxu0 %v63
    %169 = vmatpush2.msra.mxu0 %v62
    %170 = vmatprep.mubr.f32.mxu0 %v29
    %171 = vmatmul.mubr.f32.gmra.mxu0 %v28
    %v172 = vpop.f32.mrf.mxu0
    %v173 = vadd.f32 %v99, %v172
    %v174 = vpop.f32.mrf.mxu0
    %v175 = vadd.f32 %v103, %v174
    %176 = vdwg.mxu0
    %177 = vst [vmem:[%s3] sm:$0xff] %v173
    %178 = vst [vmem:[%s3 + $0x8] sm:$0xff] %v175
    // Predicated region
    $region18: #{a_call__.1} parent=1 // pred_check
      _
    $region19: #{a_call__.1} parent=1 // pred_check_branch
      %180 = sbr.rel (0) target = $region21
    $region20: #{a_call__.1} parent=1 // pred_region
      _
    $region21: #{a_call__.1} parent=1 // pred_fallthru
      _
    // Predicated region
    $region22: #{a_call__.1} parent=1 // pred_check
      _
    $region23: #{a_call__.1} parent=1 // pred_check_branch
      %182 = sbr.rel (0) target = $region25
    $region24: #{a_call__.1} parent=1 // pred_region
      _
    $region25: #{a_call__.1} parent=1 // pred_fallthru
      _
    %183 = vsyncpa [#allocation3], 1

</llo_original>
